<compile_context>
chip_gen: v7x
topology: tpu7x:2x2x1
jax: 0.10.0
libtpu: 0.0.40
codegen_flags: <defaults>
</compile_context>

<pallas_src>
import functools

import jax
import jax.numpy as jnp
from jax.experimental import pallas as pl
from jax.experimental.pallas import tpu as pltpu

_LANE = 128       # lane width (last dim)
_SUBLANE = 8      # sublane width (second-to-last dim)
_NEG_BIG = -1e30  # f32-only fill for padded class columns -> exp() underflows to 0


def _round_up(x, m):
    return ((x + m - 1) // m) * m


def _apply_activation(y, act):
    if act == "sigmoid":
        return jax.nn.sigmoid(y)
    if act == "tanh":
        return jnp.tanh(y)
    if act == "relu":
        return jnp.maximum(y, 0.0)
    if act == "elu":
        return jnp.where(y > 0, y, jnp.expm1(y))
    raise ValueError(f"unknown activation {act!r}")


# ----------------------------- fused kernel -------------------------------- #

def fused_mlp_kernel(*refs, acts, num_layers, pack):
    """One batch tile through the entire MLP (single launch, no HBM round trips).

    refs = (x_ref, w0, b0, ..., w_{L-1}, b_{L-1}, out...)
    Weights are pre-transposed to (in, out); biases are (1, out_pad).
    Padded columns of the final bias hold -1e30 so softmax gives them 0 prob.
    """
    x_ref = refs[0]
    w_refs = refs[1:1 + 2 * num_layers:2]
    b_refs = refs[2:2 + 2 * num_layers:2]
    out_refs = refs[1 + 2 * num_layers:]

    h = x_ref[...]
    # hidden layers: Linear -> activation, all values stay in vregs/VMEM
    for li in range(num_layers - 1):
        y = jnp.dot(h, w_refs[li][...], preferred_element_type=jnp.float32)
        h = _apply_activation(y + b_refs[li][...], acts[li])

    # final layer: Linear -> softmax(dim=1)
    z = jnp.dot(h, w_refs[-1][...], preferred_element_type=jnp.float32)
    z = z + b_refs[-1][...]

    m = jnp.max(z, axis=-1, keepdims=True)
    e = jnp.exp(z - m)
    denom = jnp.sum(e, axis=-1, keepdims=True)
    p = e * pl.reciprocal(denom, approx=False)   # exact reciprocal + vmul

    if pack:
        # Pack logits (lanes 0:64) and probs (lanes 64:128) into one lane-dense
        # output -> half the HBM writeback of two (N, 128) buffers.
        half = _LANE // 2
        out_refs[0][...] = jnp.concatenate([z[:, :half], p[:, :half]], axis=-1)
    else:
        out_refs[0][...] = z
        out_refs[1][...] = p


# ----------------------------- model --------------------------------------- #

class NeuralNetworkPallas:
    """JAX/Pallas mirror of the PyTorch NeuralNetwork module."""

    def __init__(self, input_size, num_classes, list_hidden,
                 activation="sigmoid", key=None):
        if key is None:
            key = jax.random.PRNGKey(2)
        self.input_size = input_size
        self.num_classes = num_classes
        self.list_hidden = list(list_hidden)
        self.activation = activation
        # pack logits+probs into one 128-lane output when both fit
        self.pack = num_classes <= _LANE // 2

        dims = [input_size] + self.list_hidden + [num_classes]
        # x is passed unpadded -> do NOT pad the input feature dim; pad every
        # other feature dim to 128 lanes (lane-dense MXU feeds / stores).
        dims_pad = [input_size] + [_round_up(d, _LANE) for d in dims[1:]]
        self.c_pad = dims_pad[-1]

        self.params = []          # unpadded, PyTorch (out, in) convention
        self.padded_params = []   # pre-transposed + lane-padded, kernel-ready
        for i in range(len(dims) - 1):
            key, wk = jax.random.split(key)
            # matches init_weights(init_method='none'): N(0, 0.01) weights, 0 bias
            w = 0.01 * jax.random.normal(wk, (dims[i + 1], dims[i]), jnp.float32)
            b = jnp.zeros((dims[i + 1],), jnp.float32)
            self.params.append((w, b))

            # pre-transpose to (in, out); zero-pad (padded input rows are zero,
            # so e.g. sigmoid(0)=0.5 in padded lanes of h cannot contaminate
            # the next matmul).
            w_pad = jnp.zeros((dims_pad[i], dims_pad[i + 1]), jnp.float32)
            w_pad = w_pad.at[:dims[i], :dims[i + 1]].set(w.T)
            is_last = (i == len(dims) - 2)
            fill = _NEG_BIG if is_last else 0.0   # f32 assumption (see header)
            b_pad = jnp.full((1, dims_pad[i + 1]), fill, jnp.float32)
            b_pad = b_pad.at[0, :dims[i + 1]].set(b)
            self.padded_params.append((w_pad, b_pad))

        # PyTorch quirk: first activation is get_activation() (always Sigmoid);
        # subsequent hidden activations use self.activation.
        self.hidden_acts = ["sigmoid"] + [activation] * (len(self.list_hidden) - 1)

        # One compiled executable per input shape (pad + kernel + slice fused).
        self._jit_forward = jax.jit(self._forward_impl)

    # ---- traced under jax.jit ------------------------------------------- #
    def _forward_impl(self, padded_params, x):
        n, d = x.shape
        assert d == self.input_size
        num_layers = len(padded_params)

        # pad batch only to a sublane multiple; grid uses cdiv (partial last
        # block is fine: softmax is per-row, padded rows are sliced off).
        n_pad8 = _round_up(n, _SUBLANE)
        if n_pad8 <= _SUBLANE:
            tile_n = n_pad8                       # tiny batch: one tile
        elif n_pad8 <= 1024:
            # >= 2 tiles so the "parallel" batch axis shards across both
            # v7x TensorCores; still well inside the 512-1024 sweet spot.
            tile_n = _round_up(pl.cdiv(n_pad8, 2), _SUBLANE)
        else:
            tile_n = 512
        grid_n = pl.cdiv(n_pad8, tile_n)

        x_pad = x if n_pad8 == n else jnp.pad(x, ((0, n_pad8 - n), (0, 0)))

        # x block: full (unpadded) feature dim as last dim — legal since the
        # block equals the full array dim there.
        in_specs = [pl.BlockSpec((tile_n, d), lambda i: (i, 0))]
        flat_args = [x_pad]
        for (w, b) in padded_params:
            # weight-stationary: constant index_map, block == full array
            # (weights total ~200 KiB -> no custom buffering needed).
            in_specs.append(pl.BlockSpec(w.shape, lambda i: (0, 0)))
            in_specs.append(pl.BlockSpec(b.shape, lambda i: (0, 0)))
            flat_args.extend([w, b])

        kernel = functools.partial(
            fused_mlp_kernel,
            acts=tuple(self.hidden_acts),
            num_layers=num_layers,
            pack=self.pack,
        )

        if self.pack:
            out_specs = pl.BlockSpec((tile_n, _LANE), lambda i: (i, 0))
            out_shape = jax.ShapeDtypeStruct((n_pad8, _LANE), jnp.float32)
        else:
            out_specs = (pl.BlockSpec((tile_n, self.c_pad), lambda i: (i, 0)),
                         pl.BlockSpec((tile_n, self.c_pad), lambda i: (i, 0)))
            out_shape = (jax.ShapeDtypeStruct((n_pad8, self.c_pad), jnp.float32),
                         jax.ShapeDtypeStruct((n_pad8, self.c_pad), jnp.float32))

        result = pl.pallas_call(
            kernel,
            out_shape=out_shape,
            grid=(grid_n,),
            in_specs=in_specs,
            out_specs=out_specs,
            compiler_params=pltpu.CompilerParams(
                dimension_semantics=("parallel",)),
        )(*flat_args)

        c = self.num_classes
        if self.pack:
            half = _LANE // 2
            logits = result[:n, :c]
            probs = result[:n, half:half + c]
        else:
            logits = result[0][:n, :c]
            probs = result[1][:n, :c]
        return logits, probs

    # ---- public API ------------------------------------------------------ #
    def forward(self, x):
        return self._jit_forward(tuple(self.padded_params), x)

    def predict(self, probabilities):
        return jnp.argmax(probabilities, axis=1)


# ----------------------------- main ----------------------------------------- #

if __name__ == "__main__":
    N = 8            # batch
    INPUT_SIZE = 32
    HIDDEN = [64, 32]
    NUM_CLASSES = 8

    model = NeuralNetworkPallas(INPUT_SIZE, NUM_CLASSES, HIDDEN,
                                activation="sigmoid")

    x = jax.random.normal(jax.random.PRNGKey(0), (N, INPUT_SIZE), jnp.float32)

    logits, probs = model.forward(x)
    logits, probs = jax.block_until_ready((logits, probs))

    # pure-JAX reference (unpadded params, PyTorch (out, in) convention),
    # exercising the same activation list as the kernel.
    h_ref = x
    for (w, b), act in zip(model.params[:-1], model.hidden_acts):
        h_ref = _apply_activation(h_ref @ w.T + b, act)
    wl, bl = model.params[-1]
    logits_ref = h_ref @ wl.T + bl
    probs_ref = jax.nn.softmax(logits_ref, axis=1)

    assert logits.shape == (N, NUM_CLASSES)
    assert probs.shape == (N, NUM_CLASSES)
    # Tolerance covers possible MXU multi-pass rounding differences between the
    # in-kernel f32 matmuls and the XLA reference matmuls; real semantic bugs
    # (wrong activation/bias/slicing) would be orders of magnitude larger.
    assert jnp.allclose(logits, logits_ref, atol=1e-3), "logits mismatch"
    assert jnp.allclose(probs, probs_ref, atol=1e-3), "probs mismatch"
    assert jnp.allclose(jnp.sum(probs, axis=1), 1.0, atol=1e-5), "probs not normalized"

    preds = model.predict(probs)
    assert preds.shape == (N,)

    print("KERNEL_OK")
</pallas_src>

<mosaic_0001>
module attributes {stable_mosaic.version = 11 : i64} {
  func.func @fused_mlp_kernel(%arg0: i32, %arg1: memref<8x32xf32, #tpu.memory_space<vmem>>, %arg2: memref<32x128xf32, #tpu.memory_space<vmem>>, %arg3: memref<1x128xf32, #tpu.memory_space<vmem>>, %arg4: memref<128x128xf32, #tpu.memory_space<vmem>>, %arg5: memref<1x128xf32, #tpu.memory_space<vmem>>, %arg6: memref<128x128xf32, #tpu.memory_space<vmem>>, %arg7: memref<1x128xf32, #tpu.memory_space<vmem>>, %arg8: memref<8x128xf32, #tpu.memory_space<vmem>>) attributes {dimension_semantics = [#tpu.dimension_semantics<parallel>], iteration_bounds = array<i64: 1>, scalar_prefetch = 0 : i64, scratch_operands = 0 : i64, tpu.core_type = #tpu.core_type<tc>, window_params = [{transform_indices = @transform_0, window_bounds = array<i64: 8, 32>}, {pipeline_mode = #tpu.pipeline_mode<synchronous>, transform_indices = @transform_1, window_bounds = array<i64: 32, 128>}, {pipeline_mode = #tpu.pipeline_mode<synchronous>, transform_indices = @transform_2, window_bounds = array<i64: 1, 128>}, {pipeline_mode = #tpu.pipeline_mode<synchronous>, transform_indices = @transform_3, window_bounds = array<i64: 128, 128>}, {pipeline_mode = #tpu.pipeline_mode<synchronous>, transform_indices = @transform_4, window_bounds = array<i64: 1, 128>}, {pipeline_mode = #tpu.pipeline_mode<synchronous>, transform_indices = @transform_5, window_bounds = array<i64: 128, 128>}, {pipeline_mode = #tpu.pipeline_mode<synchronous>, transform_indices = @transform_6, window_bounds = array<i64: 1, 128>}, {transform_indices = @transform_7, window_bounds = array<i64: 8, 128>}]} {
    %c0 = arith.constant 0 : index
    %c0_0 = arith.constant 0 : index
    %0 = vector.load %arg1[%c0, %c0_0] : memref<8x32xf32, #tpu.memory_space<vmem>>, vector<8x32xf32>
    %c0_1 = arith.constant 0 : index
    %c0_2 = arith.constant 0 : index
    %1 = vector.load %arg2[%c0_1, %c0_2] : memref<32x128xf32, #tpu.memory_space<vmem>>, vector<32x128xf32>
    %cst = arith.constant dense<0.000000e+00> : vector<8x128xf32>
    %2 = tpu.matmul %0, %1, %cst {dimension_numbers = #tpu.dot_dimension_numbers<[1], [0], [0], [1], [0, 0, 1, 1], [], []>} : vector<8x32xf32>, vector<32x128xf32>, vector<8x128xf32> -> vector<8x128xf32>
    %c0_3 = arith.constant 0 : index
    %c0_4 = arith.constant 0 : index
    %3 = vector.load %arg3[%c0_3, %c0_4] : memref<1x128xf32, #tpu.memory_space<vmem>>, vector<1x128xf32>
    %4 = vector.broadcast %3 : vector<1x128xf32> to vector<8x128xf32>
    %5 = arith.addf %2, %4 : vector<8x128xf32>
    %6 = arith.negf %5 : vector<8x128xf32>
    %7 = math.exp %6 : vector<8x128xf32>
    %cst_5 = arith.constant 1.000000e+00 : f32
    %8 = vector.broadcast %cst_5 : f32 to vector<8x128xf32>
    %9 = arith.addf %8, %7 : vector<8x128xf32>
    %10 = arith.divf %8, %9 : vector<8x128xf32>
    %c0_6 = arith.constant 0 : index
    %c0_7 = arith.constant 0 : index
    %11 = vector.load %arg4[%c0_6, %c0_7] : memref<128x128xf32, #tpu.memory_space<vmem>>, vector<128x128xf32>
    %cst_8 = arith.constant dense<0.000000e+00> : vector<8x128xf32>
    %12 = tpu.matmul %10, %11, %cst_8 {dimension_numbers = #tpu.dot_dimension_numbers<[1], [0], [0], [1], [0, 0, 1, 1], [], []>} : vector<8x128xf32>, vector<128x128xf32>, vector<8x128xf32> -> vector<8x128xf32>
    %c0_9 = arith.constant 0 : index
    %c0_10 = arith.constant 0 : index
    %13 = vector.load %arg5[%c0_9, %c0_10] : memref<1x128xf32, #tpu.memory_space<vmem>>, vector<1x128xf32>
    %14 = vector.broadcast %13 : vector<1x128xf32> to vector<8x128xf32>
    %15 = arith.addf %12, %14 : vector<8x128xf32>
    %16 = arith.negf %15 : vector<8x128xf32>
    %17 = math.exp %16 : vector<8x128xf32>
    %cst_11 = arith.constant 1.000000e+00 : f32
    %18 = vector.broadcast %cst_11 : f32 to vector<8x128xf32>
    %19 = arith.addf %18, %17 : vector<8x128xf32>
    %20 = arith.divf %18, %19 : vector<8x128xf32>
    %c0_12 = arith.constant 0 : index
    %c0_13 = arith.constant 0 : index
    %21 = vector.load %arg6[%c0_12, %c0_13] : memref<128x128xf32, #tpu.memory_space<vmem>>, vector<128x128xf32>
    %cst_14 = arith.constant dense<0.000000e+00> : vector<8x128xf32>
    %22 = tpu.matmul %20, %21, %cst_14 {dimension_numbers = #tpu.dot_dimension_numbers<[1], [0], [0], [1], [0, 0, 1, 1], [], []>} : vector<8x128xf32>, vector<128x128xf32>, vector<8x128xf32> -> vector<8x128xf32>
    %c0_15 = arith.constant 0 : index
    %c0_16 = arith.constant 0 : index
    %23 = vector.load %arg7[%c0_15, %c0_16] : memref<1x128xf32, #tpu.memory_space<vmem>>, vector<1x128xf32>
    %24 = vector.broadcast %23 : vector<1x128xf32> to vector<8x128xf32>
    %25 = arith.addf %22, %24 : vector<8x128xf32>
    %cst_17 = arith.constant dense<0xFF800000> : vector<8xf32>
    %26 = vector.multi_reduction <maximumf>, %25, %cst_17 [1] : vector<8x128xf32> to vector<8xf32>
    %27 = vector.shape_cast %26 : vector<8xf32> to vector<8x1xf32>
    %28 = vector.broadcast %27 : vector<8x1xf32> to vector<8x128xf32>
    %29 = arith.subf %25, %28 : vector<8x128xf32>
    %30 = math.exp %29 : vector<8x128xf32>
    %cst_18 = arith.constant dense<0.000000e+00> : vector<8xf32>
    %31 = vector.multi_reduction <add>, %30, %cst_18 [1] : vector<8x128xf32> to vector<8xf32>
    %32 = vector.shape_cast %31 : vector<8xf32> to vector<8x1xf32>
    %33 = tpu.reciprocal %32 : vector<8x1xf32> -> vector<8x1xf32>
    %34 = vector.broadcast %33 : vector<8x1xf32> to vector<8x128xf32>
    %35 = arith.mulf %30, %34 : vector<8x128xf32>
    %36 = vector.extract_strided_slice %25 {offsets = [0, 0], sizes = [8, 64], strides = [1, 1]} : vector<8x128xf32> to vector<8x64xf32>
    %37 = vector.extract_strided_slice %35 {offsets = [0, 0], sizes = [8, 64], strides = [1, 1]} : vector<8x128xf32> to vector<8x64xf32>
    %38 = tpu.concatenate %36, %37 in 1 : vector<8x64xf32>, vector<8x64xf32> -> vector<8x128xf32>
    %c0_19 = arith.constant 0 : index
    %c0_20 = arith.constant 0 : index
    %39 = vector.load %arg8[%c0_19, %c0_20] : memref<8x128xf32, #tpu.memory_space<vmem>>, vector<8x128xf32>
    tpu.vector_store %arg8[%c0_19, %c0_20], %38 {strides = array<i32>} : memref<8x128xf32, #tpu.memory_space<vmem>>, vector<8x128xf32>,
    return
  }
  func.func @transform_0(%arg0: i32) -> (i32, i32) {
    %c0_i32 = arith.constant 0 : i32
    %c0_i32_0 = arith.constant 0 : i32
    return %arg0, %c0_i32 : i32, i32
  }
  func.func @transform_1(%arg0: i32) -> (i32, i32) {
    %c0_i32 = arith.constant 0 : i32
    %c0_i32_0 = arith.constant 0 : i32
    %c0_i32_1 = arith.constant 0 : i32
    return %c0_i32, %c0_i32_0 : i32, i32
  }
  func.func @transform_2(%arg0: i32) -> (i32, i32) {
    %c0_i32 = arith.constant 0 : i32
    %c0_i32_0 = arith.constant 0 : i32
    %c0_i32_1 = arith.constant 0 : i32
    return %c0_i32, %c0_i32_0 : i32, i32
  }
  func.func @transform_3(%arg0: i32) -> (i32, i32) {
    %c0_i32 = arith.constant 0 : i32
    %c0_i32_0 = arith.constant 0 : i32
    %c0_i32_1 = arith.constant 0 : i32
    return %c0_i32, %c0_i32_0 : i32, i32
  }
  func.func @transform_4(%arg0: i32) -> (i32, i32) {
    %c0_i32 = arith.constant 0 : i32
    %c0_i32_0 = arith.constant 0 : i32
    %c0_i32_1 = arith.constant 0 : i32
    return %c0_i32, %c0_i32_0 : i32, i32
  }
  func.func @transform_5(%arg0: i32) -> (i32, i32) {
    %c0_i32 = arith.constant 0 : i32
    %c0_i32_0 = arith.constant 0 : i32
    %c0_i32_1 = arith.constant 0 : i32
    return %c0_i32, %c0_i32_0 : i32, i32
  }
  func.func @transform_6(%arg0: i32) -> (i32, i32) {
    %c0_i32 = arith.constant 0 : i32
    %c0_i32_0 = arith.constant 0 : i32
    %c0_i32_1 = arith.constant 0 : i32
    return %c0_i32, %c0_i32_0 : i32, i32
  }
  func.func @transform_7(%arg0: i32) -> (i32, i32) {
    %c0_i32 = arith.constant 0 : i32
    %c0_i32_0 = arith.constant 0 : i32
    return %arg0, %c0_i32 : i32, i32
  }
}

</mosaic_0001>

<llo_original>
// kernel: _forward_impl.1
$region0: #{_forward_impl.1}
  #allocation0 [shape = 'u32[]', space=smem, size = 0x4, offset = 0x4, fixed_abs, tag = 'smem constant byte address 0x4 - core index']
  #allocation1 [shape = 'u32[144,128]{1,0:T(1,128)}', space=vmem, size = 0x12000, scoped, tag = 'internal scratch']
  %s0 = inlined_call_operand.vmem [shape: f32[8,32], index: 0, kind: input, shape index: {}]
  %s1 = inlined_call_operand.hbm [shape: f32[32,128], index: 1, kind: input, shape index: {}]
  %s2 = inlined_call_operand.vmem [shape: f32[1,128], index: 2, kind: input, shape index: {}]
  %s3 = inlined_call_operand.hbm [shape: f32[128,128], index: 3, kind: input, shape index: {}]
  %s4 = inlined_call_operand.vmem [shape: f32[1,128], index: 4, kind: input, shape index: {}]
  %s5 = inlined_call_operand.hbm [shape: f32[128,128], index: 5, kind: input, shape index: {}]
  %s6 = inlined_call_operand.vmem [shape: f32[1,128], index: 6, kind: input, shape index: {}]
  %s7 = inlined_call_operand.vmem [shape: f32[8,128], index: 7, kind: output, shape index: {}]
  %s8 = sld [smem:[#allocation0]]
  $region50: #{_forward_impl.1} parent=0
    _
  %s10 = ssub.s32 1, %s8
  %s11 = scalar_select 0, %s10, %s8
  $region1: #{_forward_impl.1} parent=0
    #allocation2 [shape = 'u8[16384]{0}', space=vmem, size = 0x4000, scoped, tag = 'input window, operand 1, single buffered']
    #allocation3 [shape = 's32[1]{0}', space=sflag, size = 0x4, scoped, tag = 'scoped memory for _forward_impl.1']
    #allocation4 [shape = 'u8[65536]{0}', space=vmem, size = 0x10000, scoped, tag = 'input window, operand 3, single buffered']
    #allocation5 [shape = 's32[1]{0}', space=sflag, size = 0x4, scoped, tag = 'scoped memory for _forward_impl.1']
    #allocation6 [shape = 'u8[65536]{0}', space=vmem, size = 0x10000, scoped, tag = 'input window, operand 5, single buffered']
    %12 = vsyncpa [#allocation3], 0
    %13 = vsyncpa [#allocation5], 0
    // Predicated region
    $region2: #{_forward_impl.1} parent=1 // pred_check
      _
    $region3: #{_forward_impl.1} parent=1 // pred_check_branch
      %15 = sbr.rel (0) target = $region5
    $region4: #{_forward_impl.1} parent=1 // pred_region
      _
    $region5: #{_forward_impl.1} parent=1 // pred_fallthru
      _
    // Predicated region
    $region6: #{_forward_impl.1} parent=1 // pred_check
      _
    $region7: #{_forward_impl.1} parent=1 // pred_check_branch
      %17 = sbr.rel (0) target = $region9
    $region8: #{_forward_impl.1} parent=1 // pred_region
      %s19 = ssub.s32 512, 512
      %20 = vsyncadd [#allocation3], %s19
      %s21 = sshll.u32 [#allocation2], 4
      %s22 = int_to_ptr.vmem [resolvable:$true] %s21
      %27 = dma.hbm_to_vmem [thread:$0]  %s1, 512, %s22, [#allocation3], 128, 128, 8
    $region9: #{_forward_impl.1} parent=1 // pred_fallthru
      _
    // Predicated region
    $region10: #{_forward_impl.1} parent=1 // pred_check
      _
    $region11: #{_forward_impl.1} parent=1 // pred_check_branch
      %29 = sbr.rel (0) target = $region13
    $region12: #{_forward_impl.1} parent=1 // pred_region
      _
    $region13: #{_forward_impl.1} parent=1 // pred_fallthru
      _
    // Predicated region
    $region14: #{_forward_impl.1} parent=1 // pred_check
      _
    $region15: #{_forward_impl.1} parent=1 // pred_check_branch
      %31 = sbr.rel (0) target = $region17
    $region16: #{_forward_impl.1} parent=1 // pred_region
      %s33 = ssub.s32 2048, 2048
      %34 = vsyncadd [#allocation5], %s33
      %s35 = sshll.u32 [#allocation4], 4
      %s36 = int_to_ptr.vmem [resolvable:$true] %s35
      %41 = dma.hbm_to_vmem [thread:$0]  %s3, 2048, %s36, [#allocation5], 128, 128, 8
    $region17: #{_forward_impl.1} parent=1 // pred_fallthru
      _
    // Predicated region
    $region18: #{_forward_impl.1} parent=1 // pred_check
      _
    $region19: #{_forward_impl.1} parent=1 // pred_check_branch
      %43 = sbr.rel (0) target = $region21
    $region20: #{_forward_impl.1} parent=1 // pred_region
      _
    $region21: #{_forward_impl.1} parent=1 // pred_fallthru
      _
    // Predicated region
    $region22: #{_forward_impl.1} parent=1 // pred_check
      _
    $region23: #{_forward_impl.1} parent=1 // pred_check_branch
      %45 = sbr.rel (0) target = $region25
    $region24: #{_forward_impl.1} parent=1 // pred_region
      %s47 = ssub.s32 2048, 2048
      %48 = vsyncadd [#allocation5], %s47
      %s49 = sshll.u32 [#allocation6], 4
      %s50 = int_to_ptr.vmem [resolvable:$true] %s49
      %55 = dma.hbm_to_vmem [thread:$0]  %s5, 2048, %s50, [#allocation5], 128, 128, 8
    $region25: #{_forward_impl.1} parent=1 // pred_fallthru
      _
    // Predicated region
    $region26: #{_forward_impl.1} parent=1 // pred_check
      _
    $region27: #{_forward_impl.1} parent=1 // pred_check_branch
      %57 = sbr.rel (0) target = $region29
    $region28: #{_forward_impl.1} parent=1 // pred_region
      _
    $region29: #{_forward_impl.1} parent=1 // pred_fallthru
      _
    // Predicated region
    $region30: #{_forward_impl.1} parent=1 // pred_check
      _
    $region31: #{_forward_impl.1} parent=1 // pred_check_branch
      %59 = sbr.rel (0) target = $region33
    $region32: #{_forward_impl.1} parent=1 // pred_region
      %60 = dma.done [#allocation3], 512
    $region33: #{_forward_impl.1} parent=1 // pred_fallthru
      _
    // Predicated region
    $region34: #{_forward_impl.1} parent=1 // pred_check
      _
    $region35: #{_forward_impl.1} parent=1 // pred_check_branch
      %62 = sbr.rel (0) target = $region37
    $region36: #{_forward_impl.1} parent=1 // pred_region
      %63 = dma.done [#allocation5], 2048
    $region37: #{_forward_impl.1} parent=1 // pred_fallthru
      _
    // Predicated region
    $region38: #{_forward_impl.1} parent=1 // pred_check
      _
    $region39: #{_forward_impl.1} parent=1 // pred_check_branch
      %65 = sbr.rel (0) target = $region41
    $region40: #{_forward_impl.1} parent=1 // pred_region
      %66 = dma.done [#allocation5], 2048
    $region41: #{_forward_impl.1} parent=1 // pred_fallthru
      _
    %v67 = vld [vmem:[%s0] sm:$0xff]
    %v68 = vld [vmem:[#allocation2] sm:$0xff]
    %v69 = vld [vmem:[#allocation2 + $0x8] sm:$0xff]
    %v70 = vld [vmem:[#allocation2 + $0x10] sm:$0xff]
    %v71 = vld [vmem:[#allocation2 + $0x18] sm:$0xff]
    %v72 = vld [vmem:[%s2] sm:$0x1]
    %v74 = vlaneseq
    %v75 = vshrl.u32 %v74, 7
    %v76 = vsub.s32 0, %v75
    %v77 = vrot.slane %v72, %v76
    %vm79 = vcmask 261120
    %v81 = vsel %vm79, %v67, 0
    %83 = vmatprep.subr.mxu0 0.0
    %84 = vmatpush1.msra.mxu0 %v68
    %85 = vmatprep.subr.mxu0 0.0
    %86 = vmatpush1.msra.mxu0 %v69
    %87 = vmatprep.subr.mxu0 0.0
    %88 = vmatpush1.msra.mxu0 %v70
    %89 = vmatprep.subr.mxu0 0.0
    %90 = vmatpush1.msra.mxu0 %v71
    %91 = vmatprep.subr.mxu0 0.0
    %92 = vmatpush1.msra.mxu0 0.0
    %93 = vmatprep.subr.mxu0 0.0
    %94 = vmatpush1.msra.mxu0 0.0
    %95 = vmatprep.subr.mxu0 0.0
    %96 = vmatpush1.msra.mxu0 0.0
    %97 = vmatprep.subr.mxu0 0.0
    %98 = vmatpush1.msra.mxu0 0.0
    %99 = vmatprep.subr.mxu0 0.0
    %100 = vmatpush1.msra.mxu0 0.0
    %101 = vmatprep.subr.mxu0 0.0
    %102 = vmatpush1.msra.mxu0 0.0
    %103 = vmatprep.subr.mxu0 0.0
    %104 = vmatpush1.msra.mxu0 0.0
    %105 = vmatprep.subr.mxu0 0.0
    %106 = vmatpush1.msra.mxu0 0.0
    %107 = vmatprep.subr.mxu0 0.0
    %108 = vmatpush1.msra.mxu0 0.0
    %109 = vmatprep.subr.mxu0 0.0
    %110 = vmatpush1.msra.mxu0 0.0
    %111 = vmatprep.subr.mxu0 0.0
    %112 = vmatpush1.msra.mxu0 0.0
    %113 = vmatprep.subr.mxu0 0.0
    %114 = vmatpush1.msra.mxu0 0.0
    %115 = vmatprep.subr.mxu0 0.0
    %116 = vmatpush1.msra.mxu0 0.0
    %117 = vmatprep.subr.mxu0 0.0
    %118 = vmatpush1.msra.mxu0 0.0
    %119 = vmatprep.subr.mxu0 0.0
    %120 = vmatpush1.msra.mxu0 0.0
    %121 = vmatprep.subr.mxu0 0.0
    %122 = vmatpush1.msra.mxu0 0.0
    %123 = vmatprep.subr.mxu0 0.0
    %124 = vmatpush1.msra.mxu0 0.0
    %125 = vmatprep.subr.mxu0 0.0
    %126 = vmatpush1.msra.mxu0 0.0
    %127 = vmatprep.subr.mxu0 0.0
    %128 = vmatpush1.msra.mxu0 0.0
    %129 = vmatprep.subr.mxu0 0.0
    %130 = vmatpush1.msra.mxu0 0.0
    %131 = vmatprep.subr.mxu0 0.0
    %132 = vmatpush1.msra.mxu0 0.0
    %133 = vmatprep.subr.mxu0 0.0
    %134 = vmatpush1.msra.mxu0 0.0
    %135 = vmatprep.subr.mxu0 0.0
    %136 = vmatpush1.msra.mxu0 0.0
    %137 = vmatprep.subr.mxu0 0.0
    %138 = vmatpush1.msra.mxu0 0.0
    %139 = vmatprep.subr.mxu0 0.0
    %140 = vmatpush1.msra.mxu0 0.0
    %141 = vmatprep.subr.mxu0 0.0
    %142 = vmatpush1.msra.mxu0 0.0
    %143 = vmatprep.subr.mxu0 0.0
    %144 = vmatpush1.msra.mxu0 0.0
    %145 = vmatprep.subr.mxu0 0.0
    %146 = vmatpush1.msra.mxu0 0.0
    %147 = vmatprep.mubr.f32.mxu0 0.0
    %148 = vmatmul.mubr.f32.gmra.mrb[0].mxu0 %v81
    %v149 = vpop.f32.mrb[0].mxu0
    %v150 = vadd.f32 %v77, %v149
    %v151 = vpop.f32.mrb[0].mxu0
    %152 = vdwg.mxu0
    %v153 = vxor.u32 %v150, 2147483648
    %v154 = vmul.f32 %v153, 1.442695
    %v155 = vpow.pop %v154
    %v156 = vadd.f32 %v155, 1.0
    %v157 = vrcp.pop %v156
    %v158 = vmul.f32 1.0, %v157
    %v159 = vld [vmem:[#allocation4] sm:$0xff]
    %v160 = vld [vmem:[#allocation4 + $0x8] sm:$0xff]
    %v161 = vld [vmem:[#allocation4 + $0x10] sm:$0xff]
    %v162 = vld [vmem:[#allocation4 + $0x18] sm:$0xff]
    %v163 = vld [vmem:[#allocation4 + $0x20] sm:$0xff]
    %v164 = vld [vmem:[#allocation4 + $0x28] sm:$0xff]
    %v165 = vld [vmem:[#allocation4 + $0x30] sm:$0xff]
    %v166 = vld [vmem:[#allocation4 + $0x38] sm:$0xff]
    %v167 = vld [vmem:[#allocation4 + $0x40] sm:$0xff]
    %v168 = vld [vmem:[#allocation4 + $0x48] sm:$0xff]
    %v169 = vld [vmem:[#allocation4 + $0x50] sm:$0xff]
    %v170 = vld [vmem:[#allocation4 + $0x58] sm:$0xff]
    %v171 = vld [vmem:[#allocation4 + $0x60] sm:$0xff]
    %v172 = vld [vmem:[#allocation4 + $0x68] sm:$0xff]
    %v173 = vld [vmem:[#allocation4 + $0x70] sm:$0xff]
    %v174 = vld [vmem:[#allocation4 + $0x78] sm:$0xff]
    %v175 = vld [vmem:[%s4] sm:$0x1]
    %v177 = vlaneseq
    %v178 = vshrl.u32 %v177, 7
    %v179 = vsub.s32 0, %v178
    %v180 = vrot.slane %v175, %v179
    %182 = vmatprep.subr.mxu0 0.0
    %183 = vmatpush1.msra.mxu0 %v159
    %184 = vmatprep.subr.mxu0 0.0
    %185 = vmatpush1.msra.mxu0 %v160
    %186 = vmatprep.subr.mxu0 0.0
    %187 = vmatpush1.msra.mxu0 %v161
    %188 = vmatprep.subr.mxu0 0.0
    %189 = vmatpush1.msra.mxu0 %v162
    %190 = vmatprep.subr.mxu0 0.0
    %191 = vmatpush1.msra.mxu0 %v163
    %192 = vmatprep.subr.mxu0 0.0
    %193 = vmatpush1.msra.mxu0 %v164
    %194 = vmatprep.subr.mxu0 0.0
    %195 = vmatpush1.msra.mxu0 %v165
    %196 = vmatprep.subr.mxu0 0.0
    %197 = vmatpush1.msra.mxu0 %v166
    %198 = vmatprep.subr.mxu0 0.0
    %199 = vmatpush1.msra.mxu0 %v167
    %200 = vmatprep.subr.mxu0 0.0
    %201 = vmatpush1.msra.mxu0 %v168
    %202 = vmatprep.subr.mxu0 0.0
    %203 = vmatpush1.msra.mxu0 %v169
    %204 = vmatprep.subr.mxu0 0.0
    %205 = vmatpush1.msra.mxu0 %v170
    %206 = vmatprep.subr.mxu0 0.0
    %207 = vmatpush1.msra.mxu0 %v171
    %208 = vmatprep.subr.mxu0 0.0
    %209 = vmatpush1.msra.mxu0 %v172
    %210 = vmatprep.subr.mxu0 0.0
    %211 = vmatpush1.msra.mxu0 %v173
    %212 = vmatprep.subr.mxu0 0.0
    %213 = vmatpush1.msra.mxu0 %v174
    %214 = vmatprep.subr.mxu0 0.0
    %215 = vmatpush1.msra.mxu0 0.0
    %216 = vmatprep.subr.mxu0 0.0
    %217 = vmatpush1.msra.mxu0 0.0
    %218 = vmatprep.subr.mxu0 0.0
    %219 = vmatpush1.msra.mxu0 0.0
    %220 = vmatprep.subr.mxu0 0.0
    %221 = vmatpush1.msra.mxu0 0.0
    %222 = vmatprep.subr.mxu0 0.0
    %223 = vmatpush1.msra.mxu0 0.0
    %224 = vmatprep.subr.mxu0 0.0
    %225 = vmatpush1.msra.mxu0 0.0
    %226 = vmatprep.subr.mxu0 0.0
    %227 = vmatpush1.msra.mxu0 0.0
    %228 = vmatprep.subr.mxu0 0.0
    %229 = vmatpush1.msra.mxu0 0.0
    %230 = vmatprep.subr.mxu0 0.0
    %231 = vmatpush1.msra.mxu0 0.0
    %232 = vmatprep.subr.mxu0 0.0
    %233 = vmatpush1.msra.mxu0 0.0
    %234 = vmatprep.subr.mxu0 0.0
    %235 = vmatpush1.msra.mxu0 0.0
    %236 = vmatprep.subr.mxu0 0.0
    %237 = vmatpush1.msra.mxu0 0.0
    %238 = vmatprep.subr.mxu0 0.0
    %239 = vmatpush1.msra.mxu0 0.0
    %240 = vmatprep.subr.mxu0 0.0
    %241 = vmatpush1.msra.mxu0 0.0
    %242 = vmatprep.subr.mxu0 0.0
    %243 = vmatpush1.msra.mxu0 0.0
    %244 = vmatprep.subr.mxu0 0.0
    %245 = vmatpush1.msra.mxu0 0.0
    %246 = vmatprep.mubr.f32.mxu0 0.0
    %247 = vmatmul.mubr.f32.gmra.mrb[0].mxu0 %v158
    %v248 = vpop.f32.mrb[0].mxu0
    %v249 = vadd.f32 %v180, %v248
    %v250 = vpop.f32.mrb[0].mxu0
    %251 = vdwg.mxu0
    %v252 = vxor.u32 %v249, 2147483648
    %v253 = vmul.f32 %v252, 1.442695
    %v254 = vpow.pop %v253
    %v255 = vadd.f32 %v254, 1.0
    %v256 = vrcp.pop %v255
    %v257 = vmul.f32 1.0, %v256
    %v258 = vld [vmem:[#allocation6] sm:$0xff]
    %v259 = vld [vmem:[#allocation6 + $0x8] sm:$0xff]
    %v260 = vld [vmem:[#allocation6 + $0x10] sm:$0xff]
    %v261 = vld [vmem:[#allocation6 + $0x18] sm:$0xff]
    %v262 = vld [vmem:[#allocation6 + $0x20] sm:$0xff]
    %v263 = vld [vmem:[#allocation6 + $0x28] sm:$0xff]
    %v264 = vld [vmem:[#allocation6 + $0x30] sm:$0xff]
    %v265 = vld [vmem:[#allocation6 + $0x38] sm:$0xff]
    %v266 = vld [vmem:[#allocation6 + $0x40] sm:$0xff]
    %v267 = vld [vmem:[#allocation6 + $0x48] sm:$0xff]
    %v268 = vld [vmem:[#allocation6 + $0x50] sm:$0xff]
    %v269 = vld [vmem:[#allocation6 + $0x58] sm:$0xff]
    %v270 = vld [vmem:[#allocation6 + $0x60] sm:$0xff]
    %v271 = vld [vmem:[#allocation6 + $0x68] sm:$0xff]
    %v272 = vld [vmem:[#allocation6 + $0x70] sm:$0xff]
    %v273 = vld [vmem:[#allocation6 + $0x78] sm:$0xff]
    %v274 = vld [vmem:[%s6] sm:$0x1]
    %v276 = vlaneseq
    %v277 = vshrl.u32 %v276, 7
    %v278 = vsub.s32 0, %v277
    %v279 = vrot.slane %v274, %v278
    %281 = vmatprep.subr.mxu0 0.0
    %282 = vmatpush1.msra.mxu0 %v258
    %283 = vmatprep.subr.mxu0 0.0
    %284 = vmatpush1.msra.mxu0 %v259
    %285 = vmatprep.subr.mxu0 0.0
    %286 = vmatpush1.msra.mxu0 %v260
    %287 = vmatprep.subr.mxu0 0.0
    %288 = vmatpush1.msra.mxu0 %v261
    %289 = vmatprep.subr.mxu0 0.0
    %290 = vmatpush1.msra.mxu0 %v262
    %291 = vmatprep.subr.mxu0 0.0
    %292 = vmatpush1.msra.mxu0 %v263
    %293 = vmatprep.subr.mxu0 0.0
    %294 = vmatpush1.msra.mxu0 %v264
    %295 = vmatprep.subr.mxu0 0.0
    %296 = vmatpush1.msra.mxu0 %v265
    %297 = vmatprep.subr.mxu0 0.0
    %298 = vmatpush1.msra.mxu0 %v266
    %299 = vmatprep.subr.mxu0 0.0
    %300 = vmatpush1.msra.mxu0 %v267
    %301 = vmatprep.subr.mxu0 0.0
    %302 = vmatpush1.msra.mxu0 %v268
    %303 = vmatprep.subr.mxu0 0.0
    %304 = vmatpush1.msra.mxu0 %v269
    %305 = vmatprep.subr.mxu0 0.0
    %306 = vmatpush1.msra.mxu0 %v270
    %307 = vmatprep.subr.mxu0 0.0
    %308 = vmatpush1.msra.mxu0 %v271
    %309 = vmatprep.subr.mxu0 0.0
    %310 = vmatpush1.msra.mxu0 %v272
    %311 = vmatprep.subr.mxu0 0.0
    %312 = vmatpush1.msra.mxu0 %v273
    %313 = vmatprep.subr.mxu0 0.0
    %314 = vmatpush1.msra.mxu0 0.0
    %315 = vmatprep.subr.mxu0 0.0
    %316 = vmatpush1.msra.mxu0 0.0
    %317 = vmatprep.subr.mxu0 0.0
    %318 = vmatpush1.msra.mxu0 0.0
    %319 = vmatprep.subr.mxu0 0.0
    %320 = vmatpush1.msra.mxu0 0.0
    %321 = vmatprep.subr.mxu0 0.0
    %322 = vmatpush1.msra.mxu0 0.0
    %323 = vmatprep.subr.mxu0 0.0
    %324 = vmatpush1.msra.mxu0 0.0
    %325 = vmatprep.subr.mxu0 0.0
    %326 = vmatpush1.msra.mxu0 0.0
    %327 = vmatprep.subr.mxu0 0.0
    %328 = vmatpush1.msra.mxu0 0.0
    %329 = vmatprep.subr.mxu0 0.0
    %330 = vmatpush1.msra.mxu0 0.0
    %331 = vmatprep.subr.mxu0 0.0
    %332 = vmatpush1.msra.mxu0 0.0
    %333 = vmatprep.subr.mxu0 0.0
    %334 = vmatpush1.msra.mxu0 0.0
    %335 = vmatprep.subr.mxu0 0.0
    %336 = vmatpush1.msra.mxu0 0.0
    %337 = vmatprep.subr.mxu0 0.0
    %338 = vmatpush1.msra.mxu0 0.0
    %339 = vmatprep.subr.mxu0 0.0
    %340 = vmatpush1.msra.mxu0 0.0
    %341 = vmatprep.subr.mxu0 0.0
    %342 = vmatpush1.msra.mxu0 0.0
    %343 = vmatprep.subr.mxu0 0.0
    %344 = vmatpush1.msra.mxu0 0.0
    %345 = vmatprep.mubr.f32.mxu0 0.0
    %346 = vmatmul.mubr.f32.gmra.mrb[0].mxu0 %v257
    %v347 = vpop.f32.mrb[0].mxu0
    %v348 = vadd.f32 %v279, %v347
    %v349 = vpop.f32.mrb[0].mxu0
    %350 = vdwg.mxu0
    %351 = vmax.xlane.f32.xlu0 %v348
    %v352 = vpop.xlane.xlu0 %351
    %v353 = vsub.f32 %v348, %v352
    %v354 = vmul.f32 %v353, 1.442695
    %v355 = vpow.pop %v354
    %356 = vadd.xlane.f32.xlu0 %v355
    %v357 = vpop.xlane.xlu0 %356
    %v358 = vrcp.pop %v357
    %v359 = vmul.f32 %v355, %v358
    %361 = vrot.lane.b32.xlu0 %v359, 64
    %v362 = vpop.permute.xlu0 %361
    %vm364 = vcmask 523264
    %v365 = vsel %vm364, %v348, %v362
    %366 = vst [vmem:[%s7] sm:$0xff] %v365
    // Predicated region
    $region42: #{_forward_impl.1} parent=1 // pred_check
      _
    $region43: #{_forward_impl.1} parent=1 // pred_check_branch
      %368 = sbr.rel (0) target = $region45
    $region44: #{_forward_impl.1} parent=1 // pred_region
      _
    $region45: #{_forward_impl.1} parent=1 // pred_fallthru
      _
    // Predicated region
    $region46: #{_forward_impl.1} parent=1 // pred_check
      _
    $region47: #{_forward_impl.1} parent=1 // pred_check_branch
      %370 = sbr.rel (0) target = $region49
    $region48: #{_forward_impl.1} parent=1 // pred_region
      _
    $region49: #{_forward_impl.1} parent=1 // pred_fallthru
      _
    %371 = vsyncpa [#allocation3], 1
    %372 = vsyncpa [#allocation5], 1

</llo_original>
